<compile_context>
chip_gen: v6e
topology: v6e:2x2x1
jax: 0.10.0
libtpu: 0.0.40
codegen_flags: <defaults>
</compile_context>

<pallas_src>
import jax
import jax.numpy as jnp
from jax.experimental import pallas as pl
from jax.experimental.pallas import tpu as pltpu


def _mlp_kernel(x_ref,
                w1, b1, w2, b2, w3, b3, w4, b4, w5, b5, w6, b6,
                o_ref):
    """Fused 6-layer 1x1-conv MLP on a (C_in, tile_m) channels-by-pixels block."""
    h = x_ref[...]                                   # (C_in, tile_m), bf16
    # Layers 1..5: matmul + bias + ReLU (ConvBlock); layer 6: matmul + bias (plain Conv2d).
    for w_ref, b_ref, act in (
        (w1, b1, True), (w2, b2, True), (w3, b3, True),
        (w4, b4, True), (w5, b5, True), (w6, b6, False),
    ):
        # bf16 x bf16 MXU matmul with f32 accumulation.
        h = jnp.dot(w_ref[...], h.astype(w_ref.dtype),
                    preferred_element_type=jnp.float32)
        h = h + b_ref[...]                           # (C_out, 1) broadcasts over lanes
        if act:
            h = jnp.maximum(h, 0.0)
    o_ref[...] = h.astype(o_ref.dtype)


def _channel_dims(weights):
    return [weights[0].shape[1]] + [w.shape[0] for w in weights]


def _pick_tile_m(hw, c_dims, act_bytes=2, acc_bytes=4,
                 vmem_target=24 * 1024 * 1024, max_tile=2048):
    """Largest pixel tile (multiple of 128 dividing hw) whose per-step footprint fits."""
    c_max = max(c_dims)

    def per_step_bytes(t):
        return (2 * c_dims[0] * t * act_bytes       # double-buffered input blocks
                + 2 * c_dims[-1] * t * act_bytes    # double-buffered output blocks
                + 3 * c_max * t * acc_bytes)        # live f32 intermediates

    best = None
    t = 128
    while t <= min(hw, max_tile):
        if hw % t == 0 and per_step_bytes(t) <= vmem_target:
            best = t
        t += 128
    # Fallback: full pixel row — a block dim equal to the array dim is always legal.
    return best if best is not None else hw


def _vmem_limit_bytes(c_dims, tile_m, act_bytes=2, acc_bytes=4):
    """Explicit scoped-VMEM budget (matters on v5e's 16 MiB default / v7x's 64 MiB cap)."""
    params = sum(ci * co * act_bytes + co * acc_bytes
                 for ci, co in zip(c_dims[:-1], c_dims[1:]))
    per_step = (2 * c_dims[0] * tile_m * act_bytes
                + 2 * c_dims[-1] * tile_m * act_bytes
                + 4 * max(c_dims) * tile_m * acc_bytes
                + 2 * params)                        # weights/biases get double buffers too
    # Generous headroom, clamped to v7x's 64 MiB physical VMEM.
    return int(min(max(2 * per_step, 32 * 1024 * 1024), 64 * 1024 * 1024))


def conv_mlp_forward(x_nchw, weights, biases, *, tile_m=None):
    """ConvolutionalMLP forward pass.

    Args:
      x_nchw: (N, C_in, H, W) input, PyTorch layout (bf16 recommended for HBM traffic).
      weights: 6 arrays, weights[i] of shape (C_out_i, C_in_i), BN already folded in.
      biases:  6 arrays, biases[i] of shape (C_out_i, 1), float32.
    Returns:
      (N, C_out_final, H, W) bf16 output.
    """
    N, C_in, H, W = x_nchw.shape
    c_dims = _channel_dims(weights)
    assert c_dims[0] == C_in
    C_out = c_dims[-1]
    HW = H * W

    if tile_m is None:
        tile_m = _pick_tile_m(HW, c_dims, act_bytes=x_nchw.dtype.itemsize)
    assert HW % tile_m == 0, "H*W must be divisible by tile_m"
    num_tiles = HW // tile_m

    # Free view (no transpose): channels on sublanes, pixels on lanes.
    x_view = x_nchw.reshape(N, C_in, HW)

    in_specs = [pl.BlockSpec((None, C_in, tile_m), lambda n, t: (n, 0, t))]
    operands = [x_view]
    for w, b in zip(weights, biases):
        # Grid-invariant parameters (constant index map -> re-DMA skipped between steps).
        # For large base_channels, pipeline_mode=pl.Buffered(1) would reclaim the second
        # buffer's VMEM; at these sizes it is negligible, so we keep the default.
        in_specs.append(pl.BlockSpec(w.shape, lambda n, t: (0, 0)))
        in_specs.append(pl.BlockSpec(b.shape, lambda n, t: (0, 0)))
        operands.append(w)
        operands.append(b)

    # Lane-dense output: last dim is tile_m (>=128), C_out sits on sublanes.
    out_spec = pl.BlockSpec((None, C_out, tile_m), lambda n, t: (n, 0, t))

    out = pl.pallas_call(
        _mlp_kernel,
        out_shape=jax.ShapeDtypeStruct((N, C_out, HW), jnp.bfloat16),
        grid_spec=pltpu.PrefetchScalarGridSpec(
            num_scalar_prefetch=0,
            grid=(N, num_tiles),
            in_specs=in_specs,
            out_specs=out_spec,
        ),
        compiler_params=pltpu.CompilerParams(
            dimension_semantics=("parallel", "parallel"),
            vmem_limit_bytes=_vmem_limit_bytes(c_dims, tile_m),
        ),
    )(*operands)

    return out.reshape(N, C_out, H, W)


def make_params(key, base_channels, in_channels, out_channels,
                param_dtype=jnp.bfloat16):
    """Deterministic synthetic parameters, BN folded in (eval mode, default stats)."""
    dims = [
        in_channels,
        base_channels * 16,
        base_channels * 8,
        base_channels * 4,
        base_channels * 2,
        base_channels,
        out_channels,
    ]
    bn_eps = 1e-5
    bn_scale = 1.0 / jnp.sqrt(1.0 + bn_eps)  # gamma=1, beta=0, mean=0, var=1

    weights, biases = [], []
    for li in range(6):
        c_in, c_out = dims[li], dims[li + 1]
        key, kw, kb = jax.random.split(key, 3)
        # PyTorch-ish uniform init scale for Conv2d with 1x1 kernel.
        bound = 1.0 / jnp.sqrt(jnp.asarray(c_in, jnp.float32))
        w = jax.random.uniform(kw, (c_out, c_in), jnp.float32, -bound, bound)
        b = jax.random.uniform(kb, (c_out,), jnp.float32, -bound, bound)
        if li < 5:  # ConvBlock layers: fold eval-mode BatchNorm scale
            w = w * bn_scale
            b = b * bn_scale
        weights.append(w.astype(param_dtype))        # (C_out, C_in), bf16
        biases.append(b.reshape(c_out, 1))           # (C_out, 1), f32
    return weights, biases


def reference_forward(x_nchw, weights, biases):
    """Pure-JAX reference with identical dtype handling (bf16 matmuls, f32 accumulation)."""
    N, C_in, H, W = x_nchw.shape
    h = x_nchw.reshape(N, C_in, H * W)
    for li, (w, b) in enumerate(zip(weights, biases)):
        h = jnp.einsum("oi,nim->nom", w, h.astype(w.dtype),
                       preferred_element_type=jnp.float32)
        h = h + b[None]
        if li < 5:
            h = jnp.maximum(h, 0.0)
    C_out = weights[-1].shape[0]
    return h.astype(jnp.bfloat16).reshape(N, C_out, H, W)


if __name__ == "__main__":
    base_channels, in_channels, out_channels = 4, 4, 3
    N, H, W = 2, 16, 16   # H*W = 256 pixels -> one 256-wide lane tile per image

    key = jax.random.PRNGKey(0)
    key, kx = jax.random.split(key)
    # bf16 activation stream halves HBM traffic on this memory-bound kernel.
    x = jax.random.normal(kx, (N, in_channels, H, W), jnp.float32).astype(jnp.bfloat16)

    weights, biases = make_params(key, base_channels, in_channels, out_channels)

    fwd = jax.jit(conv_mlp_forward)
    out = fwd(x, weights, biases)
    out = jax.block_until_ready(out)

    ref = reference_forward(x, weights, biases)
    assert out.shape == (N, out_channels, H, W), out.shape
    assert jnp.allclose(out.astype(jnp.float32), ref.astype(jnp.float32),
                        atol=2e-2, rtol=2e-2), "mismatch vs reference"

    print("KERNEL_OK")
</pallas_src>

<mosaic_0001>
module attributes {stable_mosaic.version = 11 : i64} {
  func.func @_mlp_kernel(%arg0: i32, %arg1: i32, %arg2: memref<1x4x256xbf16, #tpu.memory_space<vmem>>, %arg3: memref<64x4xbf16, #tpu.memory_space<vmem>>, %arg4: memref<64x1xf32, #tpu.memory_space<vmem>>, %arg5: memref<32x64xbf16, #tpu.memory_space<vmem>>, %arg6: memref<32x1xf32, #tpu.memory_space<vmem>>, %arg7: memref<16x32xbf16, #tpu.memory_space<vmem>>, %arg8: memref<16x1xf32, #tpu.memory_space<vmem>>, %arg9: memref<8x16xbf16, #tpu.memory_space<vmem>>, %arg10: memref<8x1xf32, #tpu.memory_space<vmem>>, %arg11: memref<4x8xbf16, #tpu.memory_space<vmem>>, %arg12: memref<4x1xf32, #tpu.memory_space<vmem>>, %arg13: memref<3x4xbf16, #tpu.memory_space<vmem>>, %arg14: memref<3x1xf32, #tpu.memory_space<vmem>>, %arg15: memref<1x3x256xbf16, #tpu.memory_space<vmem>>) attributes {dimension_semantics = [#tpu.dimension_semantics<parallel>, #tpu.dimension_semantics<parallel>], iteration_bounds = array<i64: 2, 1>, scalar_prefetch = 0 : i64, scratch_operands = 0 : i64, tpu.core_type = #tpu.core_type<tc>, window_params = [{transform_indices = @transform_0, window_bounds = array<i64: 1, 4, 256>}, {pipeline_mode = #tpu.pipeline_mode<synchronous>, transform_indices = @transform_1, window_bounds = array<i64: 64, 4>}, {pipeline_mode = #tpu.pipeline_mode<synchronous>, transform_indices = @transform_2, window_bounds = array<i64: 64, 1>}, {pipeline_mode = #tpu.pipeline_mode<synchronous>, transform_indices = @transform_3, window_bounds = array<i64: 32, 64>}, {pipeline_mode = #tpu.pipeline_mode<synchronous>, transform_indices = @transform_4, window_bounds = array<i64: 32, 1>}, {pipeline_mode = #tpu.pipeline_mode<synchronous>, transform_indices = @transform_5, window_bounds = array<i64: 16, 32>}, {pipeline_mode = #tpu.pipeline_mode<synchronous>, transform_indices = @transform_6, window_bounds = array<i64: 16, 1>}, {pipeline_mode = #tpu.pipeline_mode<synchronous>, transform_indices = @transform_7, window_bounds = array<i64: 8, 16>}, {pipeline_mode = #tpu.pipeline_mode<synchronous>, transform_indices = @transform_8, window_bounds = array<i64: 8, 1>}, {pipeline_mode = #tpu.pipeline_mode<synchronous>, transform_indices = @transform_9, window_bounds = array<i64: 4, 8>}, {pipeline_mode = #tpu.pipeline_mode<synchronous>, transform_indices = @transform_10, window_bounds = array<i64: 4, 1>}, {pipeline_mode = #tpu.pipeline_mode<synchronous>, transform_indices = @transform_11, window_bounds = array<i64: 3, 4>}, {pipeline_mode = #tpu.pipeline_mode<synchronous>, transform_indices = @transform_12, window_bounds = array<i64: 3, 1>}, {transform_indices = @transform_13, window_bounds = array<i64: 1, 3, 256>}]} {
    %c0 = arith.constant 0 : index
    %c0_0 = arith.constant 0 : index
    %c0_1 = arith.constant 0 : index
    %0 = vector.load %arg2[%c0, %c0_0, %c0_1] : memref<1x4x256xbf16, #tpu.memory_space<vmem>>, vector<1x4x256xbf16>
    %1 = vector.shape_cast %0 : vector<1x4x256xbf16> to vector<4x256xbf16>
    %c0_2 = arith.constant 0 : index
    %c0_3 = arith.constant 0 : index
    %2 = vector.load %arg3[%c0_2, %c0_3] : memref<64x4xbf16, #tpu.memory_space<vmem>>, vector<64x4xbf16>
    %cst = arith.constant dense<0.000000e+00> : vector<64x256xf32>
    %3 = tpu.matmul %2, %1, %cst {dimension_numbers = #tpu.dot_dimension_numbers<[1], [0], [0], [1], [0, 0, 1, 1], [], []>} : vector<64x4xbf16>, vector<4x256xbf16>, vector<64x256xf32> -> vector<64x256xf32>
    %c0_4 = arith.constant 0 : index
    %c0_5 = arith.constant 0 : index
    %4 = vector.load %arg4[%c0_4, %c0_5] : memref<64x1xf32, #tpu.memory_space<vmem>>, vector<64x1xf32>
    %5 = vector.broadcast %4 : vector<64x1xf32> to vector<64x256xf32>
    %6 = arith.addf %3, %5 : vector<64x256xf32>
    %cst_6 = arith.constant 0.000000e+00 : f32
    %7 = vector.broadcast %cst_6 : f32 to vector<64x256xf32>
    %8 = arith.maximumf %6, %7 : vector<64x256xf32>
    %c0_7 = arith.constant 0 : index
    %c0_8 = arith.constant 0 : index
    %9 = vector.load %arg5[%c0_7, %c0_8] : memref<32x64xbf16, #tpu.memory_space<vmem>>, vector<32x64xbf16>
    %10 = arith.truncf %8 : vector<64x256xf32> to vector<64x256xbf16>
    %cst_9 = arith.constant dense<0.000000e+00> : vector<32x256xf32>
    %11 = tpu.matmul %9, %10, %cst_9 {dimension_numbers = #tpu.dot_dimension_numbers<[1], [0], [0], [1], [0, 0, 1, 1], [], []>} : vector<32x64xbf16>, vector<64x256xbf16>, vector<32x256xf32> -> vector<32x256xf32>
    %c0_10 = arith.constant 0 : index
    %c0_11 = arith.constant 0 : index
    %12 = vector.load %arg6[%c0_10, %c0_11] : memref<32x1xf32, #tpu.memory_space<vmem>>, vector<32x1xf32>
    %13 = vector.broadcast %12 : vector<32x1xf32> to vector<32x256xf32>
    %14 = arith.addf %11, %13 : vector<32x256xf32>
    %cst_12 = arith.constant 0.000000e+00 : f32
    %15 = vector.broadcast %cst_12 : f32 to vector<32x256xf32>
    %16 = arith.maximumf %14, %15 : vector<32x256xf32>
    %c0_13 = arith.constant 0 : index
    %c0_14 = arith.constant 0 : index
    %17 = vector.load %arg7[%c0_13, %c0_14] : memref<16x32xbf16, #tpu.memory_space<vmem>>, vector<16x32xbf16>
    %18 = arith.truncf %16 : vector<32x256xf32> to vector<32x256xbf16>
    %cst_15 = arith.constant dense<0.000000e+00> : vector<16x256xf32>
    %19 = tpu.matmul %17, %18, %cst_15 {dimension_numbers = #tpu.dot_dimension_numbers<[1], [0], [0], [1], [0, 0, 1, 1], [], []>} : vector<16x32xbf16>, vector<32x256xbf16>, vector<16x256xf32> -> vector<16x256xf32>
    %c0_16 = arith.constant 0 : index
    %c0_17 = arith.constant 0 : index
    %20 = vector.load %arg8[%c0_16, %c0_17] : memref<16x1xf32, #tpu.memory_space<vmem>>, vector<16x1xf32>
    %21 = vector.broadcast %20 : vector<16x1xf32> to vector<16x256xf32>
    %22 = arith.addf %19, %21 : vector<16x256xf32>
    %cst_18 = arith.constant 0.000000e+00 : f32
    %23 = vector.broadcast %cst_18 : f32 to vector<16x256xf32>
    %24 = arith.maximumf %22, %23 : vector<16x256xf32>
    %c0_19 = arith.constant 0 : index
    %c0_20 = arith.constant 0 : index
    %25 = vector.load %arg9[%c0_19, %c0_20] : memref<8x16xbf16, #tpu.memory_space<vmem>>, vector<8x16xbf16>
    %26 = arith.truncf %24 : vector<16x256xf32> to vector<16x256xbf16>
    %cst_21 = arith.constant dense<0.000000e+00> : vector<8x256xf32>
    %27 = tpu.matmul %25, %26, %cst_21 {dimension_numbers = #tpu.dot_dimension_numbers<[1], [0], [0], [1], [0, 0, 1, 1], [], []>} : vector<8x16xbf16>, vector<16x256xbf16>, vector<8x256xf32> -> vector<8x256xf32>
    %c0_22 = arith.constant 0 : index
    %c0_23 = arith.constant 0 : index
    %28 = vector.load %arg10[%c0_22, %c0_23] : memref<8x1xf32, #tpu.memory_space<vmem>>, vector<8x1xf32>
    %29 = vector.broadcast %28 : vector<8x1xf32> to vector<8x256xf32>
    %30 = arith.addf %27, %29 : vector<8x256xf32>
    %cst_24 = arith.constant 0.000000e+00 : f32
    %31 = vector.broadcast %cst_24 : f32 to vector<8x256xf32>
    %32 = arith.maximumf %30, %31 : vector<8x256xf32>
    %c0_25 = arith.constant 0 : index
    %c0_26 = arith.constant 0 : index
    %33 = vector.load %arg11[%c0_25, %c0_26] : memref<4x8xbf16, #tpu.memory_space<vmem>>, vector<4x8xbf16>
    %34 = arith.truncf %32 : vector<8x256xf32> to vector<8x256xbf16>
    %cst_27 = arith.constant dense<0.000000e+00> : vector<4x256xf32>
    %35 = tpu.matmul %33, %34, %cst_27 {dimension_numbers = #tpu.dot_dimension_numbers<[1], [0], [0], [1], [0, 0, 1, 1], [], []>} : vector<4x8xbf16>, vector<8x256xbf16>, vector<4x256xf32> -> vector<4x256xf32>
    %c0_28 = arith.constant 0 : index
    %c0_29 = arith.constant 0 : index
    %36 = vector.load %arg12[%c0_28, %c0_29] : memref<4x1xf32, #tpu.memory_space<vmem>>, vector<4x1xf32>
    %37 = vector.broadcast %36 : vector<4x1xf32> to vector<4x256xf32>
    %38 = arith.addf %35, %37 : vector<4x256xf32>
    %cst_30 = arith.constant 0.000000e+00 : f32
    %39 = vector.broadcast %cst_30 : f32 to vector<4x256xf32>
    %40 = arith.maximumf %38, %39 : vector<4x256xf32>
    %c0_31 = arith.constant 0 : index
    %c0_32 = arith.constant 0 : index
    %41 = vector.load %arg13[%c0_31, %c0_32] : memref<3x4xbf16, #tpu.memory_space<vmem>>, vector<3x4xbf16>
    %42 = arith.truncf %40 : vector<4x256xf32> to vector<4x256xbf16>
    %cst_33 = arith.constant dense<0.000000e+00> : vector<3x256xf32>
    %43 = tpu.matmul %41, %42, %cst_33 {dimension_numbers = #tpu.dot_dimension_numbers<[1], [0], [0], [1], [0, 0, 1, 1], [], []>} : vector<3x4xbf16>, vector<4x256xbf16>, vector<3x256xf32> -> vector<3x256xf32>
    %c0_34 = arith.constant 0 : index
    %c0_35 = arith.constant 0 : index
    %44 = vector.load %arg14[%c0_34, %c0_35] : memref<3x1xf32, #tpu.memory_space<vmem>>, vector<3x1xf32>
    %45 = vector.broadcast %44 : vector<3x1xf32> to vector<3x256xf32>
    %46 = arith.addf %43, %45 : vector<3x256xf32>
    %47 = arith.truncf %46 : vector<3x256xf32> to vector<3x256xbf16>
    %c0_36 = arith.constant 0 : index
    %c0_37 = arith.constant 0 : index
    %c0_38 = arith.constant 0 : index
    %48 = vector.load %arg15[%c0_36, %c0_37, %c0_38] : memref<1x3x256xbf16, #tpu.memory_space<vmem>>, vector<1x3x256xbf16>
    %49 = vector.shape_cast %48 : vector<1x3x256xbf16> to vector<3x256xbf16>
    %50 = vector.shape_cast %47 : vector<3x256xbf16> to vector<1x3x256xbf16>
    tpu.vector_store %arg15[%c0_36, %c0_37, %c0_38], %50 {strides = array<i32>} : memref<1x3x256xbf16, #tpu.memory_space<vmem>>, vector<1x3x256xbf16>,
    return
  }
  func.func @transform_0(%arg0: i32, %arg1: i32) -> (i32, i32, i32) {
    %c0_i32 = arith.constant 0 : i32
    %c0_i32_0 = arith.constant 0 : i32
    return %arg0, %c0_i32, %arg1 : i32, i32, i32
  }
  func.func @transform_1(%arg0: i32, %arg1: i32) -> (i32, i32) {
    %c0_i32 = arith.constant 0 : i32
    %c0_i32_0 = arith.constant 0 : i32
    %c0_i32_1 = arith.constant 0 : i32
    return %c0_i32, %c0_i32_0 : i32, i32
  }
  func.func @transform_2(%arg0: i32, %arg1: i32) -> (i32, i32) {
    %c0_i32 = arith.constant 0 : i32
    %c0_i32_0 = arith.constant 0 : i32
    %c0_i32_1 = arith.constant 0 : i32
    return %c0_i32, %c0_i32_0 : i32, i32
  }
  func.func @transform_3(%arg0: i32, %arg1: i32) -> (i32, i32) {
    %c0_i32 = arith.constant 0 : i32
    %c0_i32_0 = arith.constant 0 : i32
    %c0_i32_1 = arith.constant 0 : i32
    return %c0_i32, %c0_i32_0 : i32, i32
  }
  func.func @transform_4(%arg0: i32, %arg1: i32) -> (i32, i32) {
    %c0_i32 = arith.constant 0 : i32
    %c0_i32_0 = arith.constant 0 : i32
    %c0_i32_1 = arith.constant 0 : i32
    return %c0_i32, %c0_i32_0 : i32, i32
  }
  func.func @transform_5(%arg0: i32, %arg1: i32) -> (i32, i32) {
    %c0_i32 = arith.constant 0 : i32
    %c0_i32_0 = arith.constant 0 : i32
    %c0_i32_1 = arith.constant 0 : i32
    return %c0_i32, %c0_i32_0 : i32, i32
  }
  func.func @transform_6(%arg0: i32, %arg1: i32) -> (i32, i32) {
    %c0_i32 = arith.constant 0 : i32
    %c0_i32_0 = arith.constant 0 : i32
    %c0_i32_1 = arith.constant 0 : i32
    return %c0_i32, %c0_i32_0 : i32, i32
  }
  func.func @transform_7(%arg0: i32, %arg1: i32) -> (i32, i32) {
    %c0_i32 = arith.constant 0 : i32
    %c0_i32_0 = arith.constant 0 : i32
    %c0_i32_1 = arith.constant 0 : i32
    return %c0_i32, %c0_i32_0 : i32, i32
  }
  func.func @transform_8(%arg0: i32, %arg1: i32) -> (i32, i32) {
    %c0_i32 = arith.constant 0 : i32
    %c0_i32_0 = arith.constant 0 : i32
    %c0_i32_1 = arith.constant 0 : i32
    return %c0_i32, %c0_i32_0 : i32, i32
  }
  func.func @transform_9(%arg0: i32, %arg1: i32) -> (i32, i32) {
    %c0_i32 = arith.constant 0 : i32
    %c0_i32_0 = arith.constant 0 : i32
    %c0_i32_1 = arith.constant 0 : i32
    return %c0_i32, %c0_i32_0 : i32, i32
  }
  func.func @transform_10(%arg0: i32, %arg1: i32) -> (i32, i32) {
    %c0_i32 = arith.constant 0 : i32
    %c0_i32_0 = arith.constant 0 : i32
    %c0_i32_1 = arith.constant 0 : i32
    return %c0_i32, %c0_i32_0 : i32, i32
  }
  func.func @transform_11(%arg0: i32, %arg1: i32) -> (i32, i32) {
    %c0_i32 = arith.constant 0 : i32
    %c0_i32_0 = arith.constant 0 : i32
    %c0_i32_1 = arith.constant 0 : i32
    return %c0_i32, %c0_i32_0 : i32, i32
  }
  func.func @transform_12(%arg0: i32, %arg1: i32) -> (i32, i32) {
    %c0_i32 = arith.constant 0 : i32
    %c0_i32_0 = arith.constant 0 : i32
    %c0_i32_1 = arith.constant 0 : i32
    return %c0_i32, %c0_i32_0 : i32, i32
  }
  func.func @transform_13(%arg0: i32, %arg1: i32) -> (i32, i32, i32) {
    %c0_i32 = arith.constant 0 : i32
    %c0_i32_0 = arith.constant 0 : i32
    return %arg0, %c0_i32, %arg1 : i32, i32, i32
  }
}

</mosaic_0001>

<llo_original>
// kernel: conv_mlp_forward.1
$region0: #{conv_mlp_forward.1}
  #allocation0 [shape = 'u32[]', space=smem, size = 0x4, offset = 0x4, fixed_abs, tag = 'smem constant byte address 0x4 - core index']
  #allocation1 [shape = 'u32[144,128]{1,0:T(1,128)}', space=vmem, size = 0x12000, scoped, tag = 'internal scratch']
  %s0 = inlined_call_operand.vmem [shape: bf16[2,4,256], index: 0, kind: input, shape index: {}]
  %s1 = inlined_call_operand.vmem [shape: bf16[64,4], index: 1, kind: input, shape index: {}]
  %s2 = inlined_call_operand.vmem [shape: f32[64,1], index: 2, kind: input, shape index: {}]
  %s3 = inlined_call_operand.vmem [shape: bf16[32,64], index: 3, kind: input, shape index: {}]
  %s4 = inlined_call_operand.vmem [shape: f32[32,1], index: 4, kind: input, shape index: {}]
  %s5 = inlined_call_operand.vmem [shape: bf16[16,32], index: 5, kind: input, shape index: {}]
  %s6 = inlined_call_operand.vmem [shape: f32[16,1], index: 6, kind: input, shape index: {}]
  %s7 = inlined_call_operand.vmem [shape: bf16[8,16], index: 7, kind: input, shape index: {}]
  %s8 = inlined_call_operand.vmem [shape: f32[8,1], index: 8, kind: input, shape index: {}]
  %s9 = inlined_call_operand.vmem [shape: bf16[4,8], index: 9, kind: input, shape index: {}]
  %s10 = inlined_call_operand.vmem [shape: f32[4,1], index: 10, kind: input, shape index: {}]
  %s11 = inlined_call_operand.vmem [shape: bf16[3,4], index: 11, kind: input, shape index: {}]
  %s12 = inlined_call_operand.vmem [shape: f32[3,1], index: 12, kind: input, shape index: {}]
  %s13 = inlined_call_operand.vmem [shape: bf16[2,3,256], index: 13, kind: output, shape index: {}]
  %s14 = sld [smem:[#allocation0]]
  $region85: #{conv_mlp_forward.1} parent=0
    _
  %s16 = ssub.s32 1, %s14
  %s17 = scalar_select 0, %s16, %s14
  loop: start=0, step=1, limit=4
  $region2: #{conv_mlp_forward.1} parent=0 // loop_pre_header
    _
  $region3: #{conv_mlp_forward.1} parent=0 // loop_header
    %s19 = sphi 0, %s23
    %p20 = scmp.ge.s32.totalorder %s19, 4
    %s26 = sphi 0, %s38
    %s27 = sphi 0, %s34
    %s28 = sphi 0, %s26
    %s29 = sphi 0, %s27
    %s30 = sphi 0, %s28
    %s31 = sphi 0, %s29
    %s43 = sphi 0, %s45
    %s46 = sphi 0, %s43
    %s47 = sphi 0, %s46
    %s63 = sphi 0, %s47
    %s67 = sphi 0, %s67
    %s69 = sphi 0, %s67
    %s70 = sphi 0, %s69
    %s84 = sphi 0, %s70
    %s88 = sphi 0, %s88
    %s90 = sphi 0, %s88
    %s91 = sphi 0, %s90
    %s105 = sphi 0, %s91
    %s109 = sphi 0, %s109
    %s111 = sphi 0, %s109
    %s112 = sphi 0, %s111
    %s126 = sphi 0, %s112
    %s130 = sphi 0, %s130
    %s132 = sphi 0, %s130
    %s133 = sphi 0, %s132
    %s147 = sphi 0, %s133
    %s151 = sphi 0, %s151
    %s153 = sphi 0, %s151
    %s154 = sphi 0, %s153
    %s168 = sphi 0, %s154
    %s172 = sphi 0, %s172
    %s174 = sphi 0, %s172
    %s175 = sphi 0, %s174
    %s189 = sphi 0, %s175
    %s193 = sphi 0, %s193
    %s195 = sphi 0, %s193
    %s196 = sphi 0, %s195
    %s210 = sphi 0, %s196
    %s214 = sphi 0, %s214
    %s216 = sphi 0, %s214
    %s217 = sphi 0, %s216
    %s231 = sphi 0, %s217
    %s235 = sphi 0, %s235
    %s237 = sphi 0, %s235
    %s238 = sphi 0, %s237
    %s252 = sphi 0, %s238
    %s256 = sphi 0, %s256
    %s258 = sphi 0, %s256
    %s259 = sphi 0, %s258
    %s273 = sphi 0, %s259
    %s277 = sphi 0, %s277
    %s279 = sphi 0, %s277
    %s280 = sphi 0, %s279
    %s294 = sphi 0, %s280
    %s298 = sphi 0, %s298
    %s300 = sphi 0, %s298
    %s301 = sphi 0, %s300
    %s315 = sphi 0, %s301
    %s323 = sphi 0, %s325
    %s326 = sphi 0, %s323
    %s327 = sphi 0, %s326
    %s343 = sphi 0, %s327
  $region4: #{conv_mlp_forward.1} parent=0 // loop_header_branch
    %22 = sbr.rel (%p20) target = $region8
  $region5: #{conv_mlp_forward.1} parent=0 // loop_body
    %s24 = ssub.s32 %s19, 1
    %s25 = ssub.s32 %s19, 2
    %s32 = sadd.s32 1, %s27
    %p33 = scmp.ge.s32.totalorder %s32, 1
    %s34 = scalar_select %p33, 0, %s32
    %s35 = sadd.s32 1, %s26
    %s36 = scalar_select %p33, %s35, %s26
    %p37 = scmp.ge.s32.totalorder %s36, 2
    %s38 = scalar_select %p37, 0, %s36
    %s39 = ssub.s32 %s26, %s38
    %s40 = ssub.s32 %s27, %s34
    %s41 = sor.u32 %s39, %s40
    %p42 = scmp.eq.s32.totalorder %s41, 0
    %s44 = sadd.s32 %s43, 1
    %s45 = scalar_select %p42, %s43, %s44
    %p48 = pneg %p42
    %p49 = scmp.eq.s32.totalorder %s19, 1
    %p50 = por %p48, %p49
    %p51 = scmp.ne.s32.totalorder %s43, %s46
    %p52 = scmp.eq.s32.totalorder %s19, 0
    %p53 = por %p51, %p52
    %p54 = scmp.ne.s32.totalorder %s43, %s46
    %p55 = scmp.eq.s32.totalorder %s24, 1
    %p56 = por %p54, %p55
    %p57 = scmp.ne.s32.totalorder %s46, %s47
    %p58 = scmp.eq.s32.totalorder %s24, 0
    %p59 = por %p57, %p58
    %p60 = scmp.ne.s32.totalorder %s46, %s47
    %p61 = scmp.eq.s32.totalorder %s25, 1
    %p62 = por %p60, %p61
    %p64 = scmp.ne.s32.totalorder %s47, %s63
    %p65 = scmp.eq.s32.totalorder %s25, 0
    %p66 = por %p64, %p65
    %s68 = sadd.s32 %s67, 1
    %p71 = scmp.eq.s32.totalorder %s19, 1
    %p72 = scmp.ne.s32.totalorder %s67, %s69
    %p73 = scmp.eq.s32.totalorder %s19, 0
    %p74 = por %p72, %p73
    %p75 = scmp.ne.s32.totalorder %s67, %s69
    %p76 = scmp.eq.s32.totalorder %s24, 1
    %p77 = por %p75, %p76
    %p78 = scmp.ne.s32.totalorder %s69, %s70
    %p79 = scmp.eq.s32.totalorder %s24, 0
    %p80 = por %p78, %p79
    %p81 = scmp.ne.s32.totalorder %s69, %s70
    %p82 = scmp.eq.s32.totalorder %s25, 1
    %p83 = por %p81, %p82
    %p85 = scmp.ne.s32.totalorder %s70, %s84
    %p86 = scmp.eq.s32.totalorder %s25, 0
    %p87 = por %p85, %p86
    %s89 = sadd.s32 %s88, 1
    %p92 = scmp.eq.s32.totalorder %s19, 1
    %p93 = scmp.ne.s32.totalorder %s88, %s90
    %p94 = scmp.eq.s32.totalorder %s19, 0
    %p95 = por %p93, %p94
    %p96 = scmp.ne.s32.totalorder %s88, %s90
    %p97 = scmp.eq.s32.totalorder %s24, 1
    %p98 = por %p96, %p97
    %p99 = scmp.ne.s32.totalorder %s90, %s91
    %p100 = scmp.eq.s32.totalorder %s24, 0
    %p101 = por %p99, %p100
    %p102 = scmp.ne.s32.totalorder %s90, %s91
    %p103 = scmp.eq.s32.totalorder %s25, 1
    %p104 = por %p102, %p103
    %p106 = scmp.ne.s32.totalorder %s91, %s105
    %p107 = scmp.eq.s32.totalorder %s25, 0
    %p108 = por %p106, %p107
    %s110 = sadd.s32 %s109, 1
    %p113 = scmp.eq.s32.totalorder %s19, 1
    %p114 = scmp.ne.s32.totalorder %s109, %s111
    %p115 = scmp.eq.s32.totalorder %s19, 0
    %p116 = por %p114, %p115
    %p117 = scmp.ne.s32.totalorder %s109, %s111
    %p118 = scmp.eq.s32.totalorder %s24, 1
    %p119 = por %p117, %p118
    %p120 = scmp.ne.s32.totalorder %s111, %s112
    %p121 = scmp.eq.s32.totalorder %s24, 0
    %p122 = por %p120, %p121
    %p123 = scmp.ne.s32.totalorder %s111, %s112
    %p124 = scmp.eq.s32.totalorder %s25, 1
    %p125 = por %p123, %p124
    %p127 = scmp.ne.s32.totalorder %s112, %s126
    %p128 = scmp.eq.s32.totalorder %s25, 0
    %p129 = por %p127, %p128
    %s131 = sadd.s32 %s130, 1
    %p134 = scmp.eq.s32.totalorder %s19, 1
    %p135 = scmp.ne.s32.totalorder %s130, %s132
    %p136 = scmp.eq.s32.totalorder %s19, 0
    %p137 = por %p135, %p136
    %p138 = scmp.ne.s32.totalorder %s130, %s132
    %p139 = scmp.eq.s32.totalorder %s24, 1
    %p140 = por %p138, %p139
    %p141 = scmp.ne.s32.totalorder %s132, %s133
    %p142 = scmp.eq.s32.totalorder %s24, 0
    %p143 = por %p141, %p142
    %p144 = scmp.ne.s32.totalorder %s132, %s133
    %p145 = scmp.eq.s32.totalorder %s25, 1
    %p146 = por %p144, %p145
    %p148 = scmp.ne.s32.totalorder %s133, %s147
    %p149 = scmp.eq.s32.totalorder %s25, 0
    %p150 = por %p148, %p149
    %s152 = sadd.s32 %s151, 1
    %p155 = scmp.eq.s32.totalorder %s19, 1
    %p156 = scmp.ne.s32.totalorder %s151, %s153
    %p157 = scmp.eq.s32.totalorder %s19, 0
    %p158 = por %p156, %p157
    %p159 = scmp.ne.s32.totalorder %s151, %s153
    %p160 = scmp.eq.s32.totalorder %s24, 1
    %p161 = por %p159, %p160
    %p162 = scmp.ne.s32.totalorder %s153, %s154
    %p163 = scmp.eq.s32.totalorder %s24, 0
    %p164 = por %p162, %p163
    %p165 = scmp.ne.s32.totalorder %s153, %s154
    %p166 = scmp.eq.s32.totalorder %s25, 1
    %p167 = por %p165, %p166
    %p169 = scmp.ne.s32.totalorder %s154, %s168
    %p170 = scmp.eq.s32.totalorder %s25, 0
    %p171 = por %p169, %p170
    %s173 = sadd.s32 %s172, 1
    %p176 = scmp.eq.s32.totalorder %s19, 1
    %p177 = scmp.ne.s32.totalorder %s172, %s174
    %p178 = scmp.eq.s32.totalorder %s19, 0
    %p179 = por %p177, %p178
    %p180 = scmp.ne.s32.totalorder %s172, %s174
    %p181 = scmp.eq.s32.totalorder %s24, 1
    %p182 = por %p180, %p181
    %p183 = scmp.ne.s32.totalorder %s174, %s175
    %p184 = scmp.eq.s32.totalorder %s24, 0
    %p185 = por %p183, %p184
    %p186 = scmp.ne.s32.totalorder %s174, %s175
    %p187 = scmp.eq.s32.totalorder %s25, 1
    %p188 = por %p186, %p187
    %p190 = scmp.ne.s32.totalorder %s175, %s189
    %p191 = scmp.eq.s32.totalorder %s25, 0
    %p192 = por %p190, %p191
    %s194 = sadd.s32 %s193, 1
    %p197 = scmp.eq.s32.totalorder %s19, 1
    %p198 = scmp.ne.s32.totalorder %s193, %s195
    %p199 = scmp.eq.s32.totalorder %s19, 0
    %p200 = por %p198, %p199
    %p201 = scmp.ne.s32.totalorder %s193, %s195
    %p202 = scmp.eq.s32.totalorder %s24, 1
    %p203 = por %p201, %p202
    %p204 = scmp.ne.s32.totalorder %s195, %s196
    %p205 = scmp.eq.s32.totalorder %s24, 0
    %p206 = por %p204, %p205
    %p207 = scmp.ne.s32.totalorder %s195, %s196
    %p208 = scmp.eq.s32.totalorder %s25, 1
    %p209 = por %p207, %p208
    %p211 = scmp.ne.s32.totalorder %s196, %s210
    %p212 = scmp.eq.s32.totalorder %s25, 0
    %p213 = por %p211, %p212
    %s215 = sadd.s32 %s214, 1
    %p218 = scmp.eq.s32.totalorder %s19, 1
    %p219 = scmp.ne.s32.totalorder %s214, %s216
    %p220 = scmp.eq.s32.totalorder %s19, 0
    %p221 = por %p219, %p220
    %p222 = scmp.ne.s32.totalorder %s214, %s216
    %p223 = scmp.eq.s32.totalorder %s24, 1
    %p224 = por %p222, %p223
    %p225 = scmp.ne.s32.totalorder %s216, %s217
    %p226 = scmp.eq.s32.totalorder %s24, 0
    %p227 = por %p225, %p226
    %p228 = scmp.ne.s32.totalorder %s216, %s217
    %p229 = scmp.eq.s32.totalorder %s25, 1
    %p230 = por %p228, %p229
    %p232 = scmp.ne.s32.totalorder %s217, %s231
    %p233 = scmp.eq.s32.totalorder %s25, 0
    %p234 = por %p232, %p233
    %s236 = sadd.s32 %s235, 1
    %p239 = scmp.eq.s32.totalorder %s19, 1
    %p240 = scmp.ne.s32.totalorder %s235, %s237
    %p241 = scmp.eq.s32.totalorder %s19, 0
    %p242 = por %p240, %p241
    %p243 = scmp.ne.s32.totalorder %s235, %s237
    %p244 = scmp.eq.s32.totalorder %s24, 1
    %p245 = por %p243, %p244
    %p246 = scmp.ne.s32.totalorder %s237, %s238
    %p247 = scmp.eq.s32.totalorder %s24, 0
    %p248 = por %p246, %p247
    %p249 = scmp.ne.s32.totalorder %s237, %s238
    %p250 = scmp.eq.s32.totalorder %s25, 1
    %p251 = por %p249, %p250
    %p253 = scmp.ne.s32.totalorder %s238, %s252
    %p254 = scmp.eq.s32.totalorder %s25, 0
    %p255 = por %p253, %p254
    %s257 = sadd.s32 %s256, 1
    %p260 = scmp.eq.s32.totalorder %s19, 1
    %p261 = scmp.ne.s32.totalorder %s256, %s258
    %p262 = scmp.eq.s32.totalorder %s19, 0
    %p263 = por %p261, %p262
    %p264 = scmp.ne.s32.totalorder %s256, %s258
    %p265 = scmp.eq.s32.totalorder %s24, 1
    %p266 = por %p264, %p265
    %p267 = scmp.ne.s32.totalorder %s258, %s259
    %p268 = scmp.eq.s32.totalorder %s24, 0
    %p269 = por %p267, %p268
    %p270 = scmp.ne.s32.totalorder %s258, %s259
    %p271 = scmp.eq.s32.totalorder %s25, 1
    %p272 = por %p270, %p271
    %p274 = scmp.ne.s32.totalorder %s259, %s273
    %p275 = scmp.eq.s32.totalorder %s25, 0
    %p276 = por %p274, %p275
    %s278 = sadd.s32 %s277, 1
    %p281 = scmp.eq.s32.totalorder %s19, 1
    %p282 = scmp.ne.s32.totalorder %s277, %s279
    %p283 = scmp.eq.s32.totalorder %s19, 0
    %p284 = por %p282, %p283
    %p285 = scmp.ne.s32.totalorder %s277, %s279
    %p286 = scmp.eq.s32.totalorder %s24, 1
    %p287 = por %p285, %p286
    %p288 = scmp.ne.s32.totalorder %s279, %s280
    %p289 = scmp.eq.s32.totalorder %s24, 0
    %p290 = por %p288, %p289
    %p291 = scmp.ne.s32.totalorder %s279, %s280
    %p292 = scmp.eq.s32.totalorder %s25, 1
    %p293 = por %p291, %p292
    %p295 = scmp.ne.s32.totalorder %s280, %s294
    %p296 = scmp.eq.s32.totalorder %s25, 0
    %p297 = por %p295, %p296
    %s299 = sadd.s32 %s298, 1
    %p302 = scmp.eq.s32.totalorder %s19, 1
    %p303 = scmp.ne.s32.totalorder %s298, %s300
    %p304 = scmp.eq.s32.totalorder %s19, 0
    %p305 = por %p303, %p304
    %p306 = scmp.ne.s32.totalorder %s298, %s300
    %p307 = scmp.eq.s32.totalorder %s24, 1
    %p308 = por %p306, %p307
    %p309 = scmp.ne.s32.totalorder %s300, %s301
    %p310 = scmp.eq.s32.totalorder %s24, 0
    %p311 = por %p309, %p310
    %p312 = scmp.ne.s32.totalorder %s300, %s301
    %p313 = scmp.eq.s32.totalorder %s25, 1
    %p314 = por %p312, %p313
    %p316 = scmp.ne.s32.totalorder %s301, %s315
    %p317 = scmp.eq.s32.totalorder %s25, 0
    %p318 = por %p316, %p317
    %s319 = ssub.s32 %s26, %s38
    %s320 = ssub.s32 %s27, %s34
    %s321 = sor.u32 %s319, %s320
    %p322 = scmp.eq.s32.totalorder %s321, 0
    %s324 = sadd.s32 %s323, 1
    %s325 = scalar_select %p322, %s323, %s324
    %p328 = pneg %p322
    %p329 = scmp.eq.s32.totalorder %s19, 1
    %p330 = por %p328, %p329
    %p331 = scmp.ne.s32.totalorder %s323, %s326
    %p332 = scmp.eq.s32.totalorder %s19, 0
    %p333 = por %p331, %p332
    %p334 = scmp.ne.s32.totalorder %s323, %s326
    %p335 = scmp.eq.s32.totalorder %s24, 1
    %p336 = por %p334, %p335
    %p337 = scmp.ne.s32.totalorder %s326, %s327
    %p338 = scmp.eq.s32.totalorder %s24, 0
    %p339 = por %p337, %p338
    %p340 = scmp.ne.s32.totalorder %s326, %s327
    %p341 = scmp.eq.s32.totalorder %s25, 1
    %p342 = por %p340, %p341
    %p344 = scmp.ne.s32.totalorder %s327, %s343
    %p345 = scmp.eq.s32.totalorder %s25, 0
    %p346 = por %p344, %p345
    %p347 = scmp.le.s32.totalorder 1, %s19
    %p348 = scmp.lt.s32.totalorder %s19, 3
    %p349 = pnand %p347, %p348
    %p350 = pneg %p349
    // Predicated region
    $region9: #{conv_mlp_forward.1} parent=5 // pred_check
      _
    $region10: #{conv_mlp_forward.1} parent=5 // pred_check_branch
      %352 = sbr.rel (%p349) target = $region12
    $region11: #{conv_mlp_forward.1} parent=5 // pred_region
      %s353 = ssub.s32 %s19, 1
      // Predicated region
      $region13: #{conv_mlp_forward.1} parent=11 // pred_check
        %p354 = pneg %p80
      $region14: #{conv_mlp_forward.1} parent=11 // pred_check_branch
        %356 = sbr.rel (%p354) target = $region16
      $region15: #{conv_mlp_forward.1} parent=11 // pred_region
        _
      $region16: #{conv_mlp_forward.1} parent=11 // pred_fallthru
        _
      // Predicated region
      $region17: #{conv_mlp_forward.1} parent=11 // pred_check
        %p357 = pneg %p101
      $region18: #{conv_mlp_forward.1} parent=11 // pred_check_branch
        %359 = sbr.rel (%p357) target = $region20
      $region19: #{conv_mlp_forward.1} parent=11 // pred_region
        _
      $region20: #{conv_mlp_forward.1} parent=11 // pred_fallthru
        _
      // Predicated region
      $region21: #{conv_mlp_forward.1} parent=11 // pred_check
        %p360 = pneg %p122
      $region22: #{conv_mlp_forward.1} parent=11 // pred_check_branch
        %362 = sbr.rel (%p360) target = $region24
      $region23: #{conv_mlp_forward.1} parent=11 // pred_region
        _
      $region24: #{conv_mlp_forward.1} parent=11 // pred_fallthru
        _
      // Predicated region
      $region25: #{conv_mlp_forward.1} parent=11 // pred_check
        %p363 = pneg %p143
      $region26: #{conv_mlp_forward.1} parent=11 // pred_check_branch
        %365 = sbr.rel (%p363) target = $region28
      $region27: #{conv_mlp_forward.1} parent=11 // pred_region
        _
      $region28: #{conv_mlp_forward.1} parent=11 // pred_fallthru
        _
      // Predicated region
      $region29: #{conv_mlp_forward.1} parent=11 // pred_check
        %p366 = pneg %p164
      $region30: #{conv_mlp_forward.1} parent=11 // pred_check_branch
        %368 = sbr.rel (%p366) target = $region32
      $region31: #{conv_mlp_forward.1} parent=11 // pred_region
        _
      $region32: #{conv_mlp_forward.1} parent=11 // pred_fallthru
        _
      // Predicated region
      $region33: #{conv_mlp_forward.1} parent=11 // pred_check
        %p369 = pneg %p185
      $region34: #{conv_mlp_forward.1} parent=11 // pred_check_branch
        %371 = sbr.rel (%p369) target = $region36
      $region35: #{conv_mlp_forward.1} parent=11 // pred_region
        _
      $region36: #{conv_mlp_forward.1} parent=11 // pred_fallthru
        _
      // Predicated region
      $region37: #{conv_mlp_forward.1} parent=11 // pred_check
        %p372 = pneg %p206
      $region38: #{conv_mlp_forward.1} parent=11 // pred_check_branch
        %374 = sbr.rel (%p372) target = $region40
      $region39: #{conv_mlp_forward.1} parent=11 // pred_region
        _
      $region40: #{conv_mlp_forward.1} parent=11 // pred_fallthru
        _
      // Predicated region
      $region41: #{conv_mlp_forward.1} parent=11 // pred_check
        %p375 = pneg %p227
      $region42: #{conv_mlp_forward.1} parent=11 // pred_check_branch
        %377 = sbr.rel (%p375) target = $region44
      $region43: #{conv_mlp_forward.1} parent=11 // pred_region
        _
      $region44: #{conv_mlp_forward.1} parent=11 // pred_fallthru
        _
      // Predicated region
      $region45: #{conv_mlp_forward.1} parent=11 // pred_check
        %p378 = pneg %p248
      $region46: #{conv_mlp_forward.1} parent=11 // pred_check_branch
        %380 = sbr.rel (%p378) target = $region48
      $region47: #{conv_mlp_forward.1} parent=11 // pred_region
        _
      $region48: #{conv_mlp_forward.1} parent=11 // pred_fallthru
        _
      // Predicated region
      $region49: #{conv_mlp_forward.1} parent=11 // pred_check
        %p381 = pneg %p269
      $region50: #{conv_mlp_forward.1} parent=11 // pred_check_branch
        %383 = sbr.rel (%p381) target = $region52
      $region51: #{conv_mlp_forward.1} parent=11 // pred_region
        _
      $region52: #{conv_mlp_forward.1} parent=11 // pred_fallthru
        _
      // Predicated region
      $region53: #{conv_mlp_forward.1} parent=11 // pred_check
        %p384 = pneg %p290
      $region54: #{conv_mlp_forward.1} parent=11 // pred_check_branch
        %386 = sbr.rel (%p384) target = $region56
      $region55: #{conv_mlp_forward.1} parent=11 // pred_region
        _
      $region56: #{conv_mlp_forward.1} parent=11 // pred_fallthru
        _
      // Predicated region
      $region57: #{conv_mlp_forward.1} parent=11 // pred_check
        %p387 = pneg %p311
      $region58: #{conv_mlp_forward.1} parent=11 // pred_check_branch
        %389 = sbr.rel (%p387) target = $region60
      $region59: #{conv_mlp_forward.1} parent=11 // pred_region
        _
      $region60: #{conv_mlp_forward.1} parent=11 // pred_fallthru
        _
    $region12: #{conv_mlp_forward.1} parent=5 // pred_fallthru
      _
    %p390 = scmp.lt.s32.totalorder %s19, 2
    // Predicated region
    $region61: #{conv_mlp_forward.1} parent=5 // pred_check
      %p391 = pneg %p390
    $region62: #{conv_mlp_forward.1} parent=5 // pred_check_branch
      %393 = sbr.rel (%p391) target = $region64
    $region63: #{conv_mlp_forward.1} parent=5 // pred_region
      // Predicated region
      $region65: #{conv_mlp_forward.1} parent=63 // pred_check
        %p394 = pneg %p53
      $region66: #{conv_mlp_forward.1} parent=63 // pred_check_branch
        %396 = sbr.rel (%p394) target = $region68
      $region67: #{conv_mlp_forward.1} parent=63 // pred_region
        %s397 = smul.u32 2, %s27
        %p398 = scmp.lt.s32.totalorder %s26, 1
        %s399 = scalar_select %p398, %s26, 1
        %p400 = scmp.lt.s32.totalorder %s397, 1
        %s401 = scalar_select %p400, %s397, 1
        %s402 = smul.addr %s399, 2
        %s403 = sadd.s32 %s401, %s402
        %s404 = smul.addr %s403, 2
        %s405 = scalar_lea.vmem %s0, %s404
        %s406 = smul.u32 2, %s27
      $region68: #{conv_mlp_forward.1} parent=63 // pred_fallthru
        _
    $region64: #{conv_mlp_forward.1} parent=5 // pred_fallthru
      _
    %p407 = scmp.le.s32.totalorder 1, %s19
    %p408 = scmp.lt.s32.totalorder %s19, 3
    %p409 = pnand %p407, %p408
    %p410 = pneg %p409
    // Predicated region
    $region69: #{conv_mlp_forward.1} parent=5 // pred_check
      _
    $region70: #{conv_mlp_forward.1} parent=5 // pred_check_branch
      %412 = sbr.rel (%p409) target = $region72
    $region71: #{conv_mlp_forward.1} parent=5 // pred_region
      %s413 = ssub.s32 %s19, 1
      %s414 = smul.u32 2, %s29
      %p415 = scmp.lt.s32.totalorder %s28, 1
      %s416 = scalar_select %p415, %s28, 1
      %p417 = scmp.lt.s32.totalorder %s414, 1
      %s418 = scalar_select %p417, %s414, 1
      %s419 = smul.addr %s416, 2
      %s420 = sadd.s32 %s418, %s419
      %s421 = smul.addr %s420, 2
      %s422 = scalar_lea.vmem %s0, %s421
      %p423 = pneg %p59
      %p424 = pneg %p56
      %p425 = pneg %p80
      %p426 = pneg %p77
      %p427 = pneg %p101
      %p428 = pneg %p98
      %p429 = pneg %p122
      %p430 = pneg %p119
      %p431 = pneg %p143
      %p432 = pneg %p140
      %p433 = pneg %p164
      %p434 = pneg %p161
      %p435 = pneg %p185
      %p436 = pneg %p182
      %p437 = pneg %p206
      %p438 = pneg %p203
      %p439 = pneg %p227
      %p440 = pneg %p224
      %p441 = pneg %p248
      %p442 = pneg %p245
      %p443 = pneg %p269
      %p444 = pneg %p266
      %p445 = pneg %p290
      %p446 = pneg %p287
      %p447 = pneg %p311
      %p448 = pneg %p308
      %p449 = pneg %p339
      %p450 = pneg %p336
      %s451 = smul.u32 2, %s29
      %p452 = scmp.lt.s32.totalorder %s28, 1
      %s453 = scalar_select %p452, %s28, 1
      %p454 = scmp.lt.s32.totalorder %s451, 1
      %s455 = scalar_select %p454, %s451, 1
      %s456 = smul.addr %s453, 2
      %s457 = sadd.s32 %s455, %s456
      %s458 = smul.addr %s457, 2
      %s459 = scalar_lea.vmem %s13, %s458
      %s460 = smul.u32 2, %s29
      %p461 = scmp.lt.s32.totalorder %s28, 1
      %s462 = scalar_select %p461, %s28, 1
      %p463 = scmp.lt.s32.totalorder %s460, 1
      %s464 = scalar_select %p463, %s460, 1
      %s465 = smul.addr %s462, 2
      %s466 = sadd.s32 %s464, %s465
      %s467 = smul.addr %s466, 2
      %s468 = scalar_lea.vmem %s0, %s467
      %s469 = smul.u32 2, %s29
      %s470 = smul.u32 2, %s29
      %p471 = scmp.lt.s32.totalorder %s28, 1
      %s472 = scalar_select %p471, %s28, 1
      %p473 = scmp.lt.s32.totalorder %s470, 1
      %s474 = scalar_select %p473, %s470, 1
      %s475 = smul.addr %s472, 2
      %s476 = sadd.s32 %s474, %s475
      %s477 = smul.addr %s476, 2
      %s478 = scalar_lea.vmem %s13, %s477
      %s479 = smul.u32 2, %s29
      %v481 = vld [vmem:[%s468] sm:$0xf]
      %v482 = vld [vmem:[%s1] sm:$0xf]
      %v483 = vld [vmem:[%s1 + $0x4] sm:$0xf]
      %v484 = vld [vmem:[%s1 + $0x8] sm:$0xf]
      %v485 = vld [vmem:[%s1 + $0xc] sm:$0xf]
      %v486 = vld [vmem:[%s1 + $0x10] sm:$0xf]
      %v487 = vld [vmem:[%s1 + $0x14] sm:$0xf]
      %v488 = vld [vmem:[%s1 + $0x18] sm:$0xf]
      %v489 = vld [vmem:[%s1 + $0x1c] sm:$0xf]
      %v490 = vld [vmem:[%s2] sm:$0xff]
      %v491 = vld [vmem:[%s2 + $0x8] sm:$0xff]
      %v492 = vld [vmem:[%s2 + $0x10] sm:$0xff]
      %v493 = vld [vmem:[%s2 + $0x18] sm:$0xff]
      %v494 = vld [vmem:[%s2 + $0x20] sm:$0xff]
      %v495 = vld [vmem:[%s2 + $0x28] sm:$0xff]
      %v496 = vld [vmem:[%s2 + $0x30] sm:$0xff]
      %v497 = vld [vmem:[%s2 + $0x38] sm:$0xff]
      %499 = vset.pattern.permute.xlu0 0
      %500 = vperm.xlu0 %499, %v490
      %v501 = vpop.permute.xlu0 %500
      %504 = vset.pattern.permute.xlu0 0
      %505 = vperm.xlu0 %504, %v491
      %v506 = vpop.permute.xlu0 %505
      %509 = vset.pattern.permute.xlu0 0
      %510 = vperm.xlu0 %509, %v492
      %v511 = vpop.permute.xlu0 %510
      %514 = vset.pattern.permute.xlu0 0
      %515 = vperm.xlu0 %514, %v493
      %v516 = vpop.permute.xlu0 %515
      %519 = vset.pattern.permute.xlu0 0
      %520 = vperm.xlu0 %519, %v494
      %v521 = vpop.permute.xlu0 %520
      %524 = vset.pattern.permute.xlu0 0
      %525 = vperm.xlu0 %524, %v495
      %v526 = vpop.permute.xlu0 %525
      %529 = vset.pattern.permute.xlu0 0
      %530 = vperm.xlu0 %529, %v496
      %v531 = vpop.permute.xlu0 %530
      %534 = vset.pattern.permute.xlu0 0
      %535 = vperm.xlu0 %534, %v497
      %v536 = vpop.permute.xlu0 %535
      %v546 = vunpack.c.l.b16 %v482
      %v547 = vunpack.c.l.b16 %v483
      %v548 = vunpack.c.l.b16 %v484
      %v549 = vunpack.c.l.b16 %v485
      %v550 = vunpack.c.l.b16 %v486
      %v551 = vunpack.c.l.b16 %v487
      %v552 = vunpack.c.l.b16 %v488
      %v553 = vunpack.c.l.b16 %v489
      %v554 = vpack.c.b16 %v547, %v546
      %v555 = vpack.c.b16 %v549, %v548
      %v556 = vpack.c.b16 %v551, %v550
      %v557 = vpack.c.b16 %v553, %v552
      %v560 = vunpack.c.l.s4 1983009808
      %v561 = vunpack.c.0.s8 %v560
      %v562 = vlaneseq
      %v563 = vshrl.u32 %v562, 7
      %v564 = vsub.s32 %v561, %v563
      %v565 = vrot.slane %v481, %v564
      %v566 = vcombine.high %v565, %v565
      %vm567 = vcmask 31744
      %v569 = vsel %vm567, %v554, 0
      %v572 = vsel %vm567, %v555, 0
      %v575 = vsel %vm567, %v556, 0
      %v578 = vsel %vm567, %v557, 0
      %vm580 = vcmask 1041408
      %v582 = vsel %vm580, %v565, 0
      %v585 = vsel %vm580, %v566, 0
      %587 = vmatprep.subr.bf16.mxu0 0
      %588 = vmatpush1.bf16.msra.mxu0 0
      %589 = vmatprep.subr.bf16.mxu0 0
      %590 = vmatpush1.bf16.msra.mxu0 0
      %591 = vmatprep.subr.bf16.mxu0 0
      %592 = vmatpush1.bf16.msra.mxu0 0
      %593 = vmatprep.subr.bf16.mxu0 0
      %594 = vmatpush1.bf16.msra.mxu0 0
      %595 = vmatprep.subr.bf16.mxu0 0
      %596 = vmatpush1.bf16.msra.mxu0 0
      %597 = vmatprep.subr.bf16.mxu0 0
      %598 = vmatpush1.bf16.msra.mxu0 0
      %599 = vmatprep.subr.bf16.mxu0 0
      %600 = vmatpush1.bf16.msra.mxu0 0
      %601 = vmatprep.subr.bf16.mxu0 %v585
      %602 = vmatpush1.bf16.msra.mxu0 %v582
      %603 = vmatprep.subr.bf16.mxu0 0
      %604 = vmatpush2.bf16.msra.mxu0 0
      %605 = vmatprep.subr.bf16.mxu0 0
      %606 = vmatpush2.bf16.msra.mxu0 0
      %607 = vmatprep.subr.bf16.mxu0 0
      %608 = vmatpush2.bf16.msra.mxu0 0
      %609 = vmatprep.subr.bf16.mxu0 0
      %610 = vmatpush2.bf16.msra.mxu0 0
      %611 = vmatprep.subr.bf16.mxu0 0
      %612 = vmatpush2.bf16.msra.mxu0 0
      %613 = vmatprep.subr.bf16.mxu0 0
      %614 = vmatpush2.bf16.msra.mxu0 0
      %615 = vmatprep.subr.bf16.mxu0 0
      %616 = vmatpush2.bf16.msra.mxu0 0
      %617 = vmatprep.subr.bf16.mxu0 0
      %618 = vmatpush2.bf16.msra.mxu0 0
      %619 = vmatprep.mubr.bf16.mxu0 0
      %620 = vmatmul.mubr.bf16.gmra.mxu0 %v569
      %v621 = vpop.f32.mrf.mxu0
      %v622 = vadd.f32 %v501, %v621
      %v623 = vpop.f32.mrf.mxu0
      %v624 = vadd.f32 %v501, %v623
      %v625 = vpop.f32.mrf.mxu0
      %v626 = vadd.f32 %v506, %v625
      %v627 = vpop.f32.mrf.mxu0
      %v628 = vadd.f32 %v506, %v627
      %629 = vmatprep.mubr.bf16.mxu0 0
      %630 = vmatmul.mubr.bf16.gmra.mxu0 %v572
      %v631 = vpop.f32.mrf.mxu0
      %v632 = vadd.f32 %v511, %v631
      %v633 = vpop.f32.mrf.mxu0
      %v634 = vadd.f32 %v511, %v633
      %v635 = vpop.f32.mrf.mxu0
      %v636 = vadd.f32 %v516, %v635
      %v637 = vpop.f32.mrf.mxu0
      %v638 = vadd.f32 %v516, %v637
      %639 = vmatprep.mubr.bf16.mxu0 0
      %640 = vmatmul.mubr.bf16.gmra.mxu0 %v575
      %v641 = vpop.f32.mrf.mxu0
      %v642 = vadd.f32 %v521, %v641
      %v643 = vpop.f32.mrf.mxu0
      %v644 = vadd.f32 %v521, %v643
      %v645 = vpop.f32.mrf.mxu0
      %v646 = vadd.f32 %v526, %v645
      %v647 = vpop.f32.mrf.mxu0
      %v648 = vadd.f32 %v526, %v647
      %649 = vmatprep.mubr.bf16.mxu0 0
      %650 = vmatmul.mubr.bf16.gmra.mxu0 %v578
      %v651 = vpop.f32.mrf.mxu0
      %v652 = vadd.f32 %v531, %v651
      %v653 = vpop.f32.mrf.mxu0
      %v654 = vadd.f32 %v531, %v653
      %v655 = vpop.f32.mrf.mxu0
      %v656 = vadd.f32 %v536, %v655
      %v657 = vpop.f32.mrf.mxu0
      %v658 = vadd.f32 %v536, %v657
      %659 = vdwg.mxu0
      %v660 = vmax.f32 %v622, 0.0
      %v661 = vmax.f32 %v624, 0.0
      %v662 = vmax.f32 %v626, 0.0
      %v663 = vmax.f32 %v628, 0.0
      %v664 = vmax.f32 %v632, 0.0
      %v665 = vmax.f32 %v634, 0.0
      %v666 = vmax.f32 %v636, 0.0
      %v667 = vmax.f32 %v638, 0.0
      %v668 = vmax.f32 %v642, 0.0
      %v669 = vmax.f32 %v644, 0.0
      %v670 = vmax.f32 %v646, 0.0
      %v671 = vmax.f32 %v648, 0.0
      %v672 = vmax.f32 %v652, 0.0
      %v673 = vmax.f32 %v654, 0.0
      %v674 = vmax.f32 %v656, 0.0
      %v675 = vmax.f32 %v658, 0.0
      %v676 = vld [vmem:[%s3] sm:$0xf]
      %v677 = vld [vmem:[%s3 + $0x4] sm:$0xf]
      %v678 = vld [vmem:[%s3 + $0x8] sm:$0xf]
      %v679 = vld [vmem:[%s3 + $0xc] sm:$0xf]
      %v680 = vpack.c.bf16 %v662, %v660
      %v681 = vpack.c.bf16 %v663, %v661
      %v682 = vpack.c.bf16 %v666, %v664
      %v683 = vpack.c.bf16 %v667, %v665
      %v684 = vpack.c.bf16 %v670, %v668
      %v685 = vpack.c.bf16 %v671, %v669
      %v686 = vpack.c.bf16 %v674, %v672
      %v687 = vpack.c.bf16 %v675, %v673
      %v688 = vld [vmem:[%s4] sm:$0xff]
      %v689 = vld [vmem:[%s4 + $0x8] sm:$0xff]
      %v690 = vld [vmem:[%s4 + $0x10] sm:$0xff]
      %v691 = vld [vmem:[%s4 + $0x18] sm:$0xff]
      %693 = vset.pattern.permute.xlu0 0
      %694 = vperm.xlu0 %693, %v688
      %v695 = vpop.permute.xlu0 %694
      %698 = vset.pattern.permute.xlu0 0
      %699 = vperm.xlu0 %698, %v689
      %v700 = vpop.permute.xlu0 %699
      %703 = vset.pattern.permute.xlu0 0
      %704 = vperm.xlu0 %703, %v690
      %v705 = vpop.permute.xlu0 %704
      %708 = vset.pattern.permute.xlu0 0
      %709 = vperm.xlu0 %708, %v691
      %v710 = vpop.permute.xlu0 %709
      %v716 = vunpack.c.l.b16 %v676
      %v717 = vunpack.c.l.b16 %v677
      %v718 = vunpack.c.l.b16 %v678
      %v719 = vunpack.c.l.b16 %v679
      %v720 = vpack.c.b16 %v717, %v716
      %v721 = vpack.c.b16 %v719, %v718
      %vm722 = vcmask 523264
      %v724 = vsel %vm722, %v720, 0
      %v727 = vsel %vm722, %v721, 0
      %729 = vmatprep.subr.bf16.mxu0 0
      %730 = vmatpush1.bf16.msra.mxu0 0
      %731 = vmatprep.subr.bf16.mxu0 0
      %732 = vmatpush1.bf16.msra.mxu0 0
      %733 = vmatprep.subr.bf16.mxu0 0
      %734 = vmatpush1.bf16.msra.mxu0 0
      %735 = vmatprep.subr.bf16.mxu0 0
      %736 = vmatpush1.bf16.msra.mxu0 0
      %737 = vmatprep.subr.bf16.mxu0 %v687
      %738 = vmatpush1.bf16.msra.mxu0 %v686
      %739 = vmatprep.subr.bf16.mxu0 %v685
      %740 = vmatpush1.bf16.msra.mxu0 %v684
      %741 = vmatprep.subr.bf16.mxu0 %v683
      %742 = vmatpush1.bf16.msra.mxu0 %v682
      %743 = vmatprep.subr.bf16.mxu0 %v681
      %744 = vmatpush1.bf16.msra.mxu0 %v680
      %745 = vmatprep.subr.bf16.mxu0 0
      %746 = vmatpush2.bf16.msra.mxu0 0
      %747 = vmatprep.subr.bf16.mxu0 0
      %748 = vmatpush2.bf16.msra.mxu0 0
      %749 = vmatprep.subr.bf16.mxu0 0
      %750 = vmatpush2.bf16.msra.mxu0 0
      %751 = vmatprep.subr.bf16.mxu0 0
      %752 = vmatpush2.bf16.msra.mxu0 0
      %753 = vmatprep.subr.bf16.mxu0 0
      %754 = vmatpush2.bf16.msra.mxu0 0
      %755 = vmatprep.subr.bf16.mxu0 0
      %756 = vmatpush2.bf16.msra.mxu0 0
      %757 = vmatprep.subr.bf16.mxu0 0
      %758 = vmatpush2.bf16.msra.mxu0 0
      %759 = vmatprep.subr.bf16.mxu0 0
      %760 = vmatpush2.bf16.msra.mxu0 0
      %761 = vmatprep.mubr.bf16.mxu0 0
      %762 = vmatmul.mubr.bf16.gmra.mxu0 %v724
      %v763 = vpop.f32.mrf.mxu0
      %v764 = vadd.f32 %v695, %v763
      %v765 = vpop.f32.mrf.mxu0
      %v766 = vadd.f32 %v695, %v765
      %v767 = vpop.f32.mrf.mxu0
      %v768 = vadd.f32 %v700, %v767
      %v769 = vpop.f32.mrf.mxu0
      %v770 = vadd.f32 %v700, %v769
      %771 = vmatprep.mubr.bf16.mxu0 0
      %772 = vmatmul.mubr.bf16.gmra.mxu0 %v727
      %v773 = vpop.f32.mrf.mxu0
      %v774 = vadd.f32 %v705, %v773
      %v775 = vpop.f32.mrf.mxu0
      %v776 = vadd.f32 %v705, %v775
      %v777 = vpop.f32.mrf.mxu0
      %v778 = vadd.f32 %v710, %v777
      %v779 = vpop.f32.mrf.mxu0
      %v780 = vadd.f32 %v710, %v779
      %781 = vdwg.mxu0
      %v782 = vmax.f32 %v764, 0.0
      %v783 = vmax.f32 %v766, 0.0
      %v784 = vmax.f32 %v768, 0.0
      %v785 = vmax.f32 %v770, 0.0
      %v786 = vmax.f32 %v774, 0.0
      %v787 = vmax.f32 %v776, 0.0
      %v788 = vmax.f32 %v778, 0.0
      %v789 = vmax.f32 %v780, 0.0
      %v790 = vld [vmem:[%s5] sm:$0xf]
      %v791 = vld [vmem:[%s5 + $0x4] sm:$0xf]
      %v792 = vpack.c.bf16 %v784, %v782
      %v793 = vpack.c.bf16 %v785, %v783
      %v794 = vpack.c.bf16 %v788, %v786
      %v795 = vpack.c.bf16 %v789, %v787
      %v796 = vld [vmem:[%s6] sm:$0xff]
      %v797 = vld [vmem:[%s6 + $0x8] sm:$0xff]
      %799 = vset.pattern.permute.xlu0 0
      %800 = vperm.xlu0 %799, %v796
      %v801 = vpop.permute.xlu0 %800
      %804 = vset.pattern.permute.xlu0 0
      %805 = vperm.xlu0 %804, %v797
      %v806 = vpop.permute.xlu0 %805
      %v810 = vunpack.c.l.b16 %v790
      %v811 = vunpack.c.l.b16 %v791
      %v812 = vpack.c.b16 %v811, %v810
      %vm813 = vcmask 261120
      %v815 = vsel %vm813, %v812, 0
      %817 = vmatprep.subr.bf16.mxu0 0
      %818 = vmatpush1.bf16.msra.mxu0 0
      %819 = vmatprep.subr.bf16.mxu0 0
      %820 = vmatpush1.bf16.msra.mxu0 0
      %821 = vmatprep.subr.bf16.mxu0 0
      %822 = vmatpush1.bf16.msra.mxu0 0
      %823 = vmatprep.subr.bf16.mxu0 0
      %824 = vmatpush1.bf16.msra.mxu0 0
      %825 = vmatprep.subr.bf16.mxu0 0
      %826 = vmatpush1.bf16.msra.mxu0 0
      %827 = vmatprep.subr.bf16.mxu0 0
      %828 = vmatpush1.bf16.msra.mxu0 0
      %829 = vmatprep.subr.bf16.mxu0 %v795
      %830 = vmatpush1.bf16.msra.mxu0 %v794
      %831 = vmatprep.subr.bf16.mxu0 %v793
      %832 = vmatpush1.bf16.msra.mxu0 %v792
      %833 = vmatprep.subr.bf16.mxu0 0
      %834 = vmatpush2.bf16.msra.mxu0 0
      %835 = vmatprep.subr.bf16.mxu0 0
      %836 = vmatpush2.bf16.msra.mxu0 0
      %837 = vmatprep.subr.bf16.mxu0 0
      %838 = vmatpush2.bf16.msra.mxu0 0
      %839 = vmatprep.subr.bf16.mxu0 0
      %840 = vmatpush2.bf16.msra.mxu0 0
      %841 = vmatprep.subr.bf16.mxu0 0
      %842 = vmatpush2.bf16.msra.mxu0 0
      %843 = vmatprep.subr.bf16.mxu0 0
      %844 = vmatpush2.bf16.msra.mxu0 0
      %845 = vmatprep.subr.bf16.mxu0 0
      %846 = vmatpush2.bf16.msra.mxu0 0
      %847 = vmatprep.subr.bf16.mxu0 0
      %848 = vmatpush2.bf16.msra.mxu0 0
      %849 = vmatprep.mubr.bf16.mxu0 0
      %850 = vmatmul.mubr.bf16.gmra.mxu0 %v815
      %v851 = vpop.f32.mrf.mxu0
      %v852 = vadd.f32 %v801, %v851
      %v853 = vpop.f32.mrf.mxu0
      %v854 = vadd.f32 %v801, %v853
      %v855 = vpop.f32.mrf.mxu0
      %v856 = vadd.f32 %v806, %v855
      %v857 = vpop.f32.mrf.mxu0
      %v858 = vadd.f32 %v806, %v857
      %859 = vdwg.mxu0
      %v860 = vmax.f32 %v852, 0.0
      %v861 = vmax.f32 %v854, 0.0
      %v862 = vmax.f32 %v856, 0.0
      %v863 = vmax.f32 %v858, 0.0
      %v864 = vld [vmem:[%s7] sm:$0xf]
      %v865 = vpack.c.bf16 %v862, %v860
      %v866 = vpack.c.bf16 %v863, %v861
      %v867 = vld [vmem:[%s8] sm:$0xff]
      %869 = vset.pattern.permute.xlu0 0
      %870 = vperm.xlu0 %869, %v867
      %v871 = vpop.permute.xlu0 %870
      %vm873 = vcmask 130048
      %v875 = vsel %vm873, %v864, 0
      %877 = vmatprep.subr.bf16.mxu0 0
      %878 = vmatpush1.bf16.msra.mxu0 0
      %879 = vmatprep.subr.bf16.mxu0 0
      %880 = vmatpush1.bf16.msra.mxu0 0
      %881 = vmatprep.subr.bf16.mxu0 0
      %882 = vmatpush1.bf16.msra.mxu0 0
      %883 = vmatprep.subr.bf16.mxu0 0
      %884 = vmatpush1.bf16.msra.mxu0 0
      %885 = vmatprep.subr.bf16.mxu0 0
      %886 = vmatpush1.bf16.msra.mxu0 0
      %887 = vmatprep.subr.bf16.mxu0 0
      %888 = vmatpush1.bf16.msra.mxu0 0
      %889 = vmatprep.subr.bf16.mxu0 0
      %890 = vmatpush1.bf16.msra.mxu0 0
      %891 = vmatprep.subr.bf16.mxu0 %v866
      %892 = vmatpush1.bf16.msra.mxu0 %v865
      %893 = vmatprep.subr.bf16.mxu0 0
      %894 = vmatpush2.bf16.msra.mxu0 0
      %895 = vmatprep.subr.bf16.mxu0 0
      %896 = vmatpush2.bf16.msra.mxu0 0
      %897 = vmatprep.subr.bf16.mxu0 0
      %898 = vmatpush2.bf16.msra.mxu0 0
      %899 = vmatprep.subr.bf16.mxu0 0
      %900 = vmatpush2.bf16.msra.mxu0 0
      %901 = vmatprep.subr.bf16.mxu0 0
      %902 = vmatpush2.bf16.msra.mxu0 0
      %903 = vmatprep.subr.bf16.mxu0 0
      %904 = vmatpush2.bf16.msra.mxu0 0
      %905 = vmatprep.subr.bf16.mxu0 0
      %906 = vmatpush2.bf16.msra.mxu0 0
      %907 = vmatprep.subr.bf16.mxu0 0
      %908 = vmatpush2.bf16.msra.mxu0 0
      %909 = vmatprep.mubr.bf16.mxu0 0
      %910 = vmatmul.mubr.bf16.gmra.mxu0 %v875
      %v911 = vpop.f32.mrf.mxu0
      %v912 = vadd.f32 %v871, %v911
      %v913 = vpop.f32.mrf.mxu0
      %v914 = vadd.f32 %v871, %v913
      %v915 = vpop.f32.mrf.mxu0
      %v916 = vpop.f32.mrf.mxu0
      %917 = vdwg.mxu0
      %v918 = vmax.f32 %v912, 0.0
      %v919 = vmax.f32 %v914, 0.0
      %v920 = vld [vmem:[%s9] sm:$0x3]
      %v921 = vpack.c.bf16 %v918, %v918
      %v922 = vpack.c.bf16 %v919, %v919
      %v923 = vld [vmem:[%s10] sm:$0xf]
      %925 = vset.pattern.permute.xlu0 0
      %926 = vperm.xlu0 %925, %v923
      %v927 = vpop.permute.xlu0 %926
      %vm929 = vcmask 64512
      %v931 = vsel %vm929, %v920, 0
      %vm933 = vcmask 1043456
      %v935 = vsel %vm933, %v921, 0
      %v938 = vsel %vm933, %v922, 0
      %940 = vmatprep.subr.bf16.mxu0 0
      %941 = vmatpush1.bf16.msra.mxu0 0
      %942 = vmatprep.subr.bf16.mxu0 0
      %943 = vmatpush1.bf16.msra.mxu0 0
      %944 = vmatprep.subr.bf16.mxu0 0
      %945 = vmatpush1.bf16.msra.mxu0 0
      %946 = vmatprep.subr.bf16.mxu0 0
      %947 = vmatpush1.bf16.msra.mxu0 0
      %948 = vmatprep.subr.bf16.mxu0 0
      %949 = vmatpush1.bf16.msra.mxu0 0
      %950 = vmatprep.subr.bf16.mxu0 0
      %951 = vmatpush1.bf16.msra.mxu0 0
      %952 = vmatprep.subr.bf16.mxu0 0
      %953 = vmatpush1.bf16.msra.mxu0 0
      %954 = vmatprep.subr.bf16.mxu0 %v938
      %955 = vmatpush1.bf16.msra.mxu0 %v935
      %956 = vmatprep.subr.bf16.mxu0 0
      %957 = vmatpush2.bf16.msra.mxu0 0
      %958 = vmatprep.subr.bf16.mxu0 0
      %959 = vmatpush2.bf16.msra.mxu0 0
      %960 = vmatprep.subr.bf16.mxu0 0
      %961 = vmatpush2.bf16.msra.mxu0 0
      %962 = vmatprep.subr.bf16.mxu0 0
      %963 = vmatpush2.bf16.msra.mxu0 0
      %964 = vmatprep.subr.bf16.mxu0 0
      %965 = vmatpush2.bf16.msra.mxu0 0
      %966 = vmatprep.subr.bf16.mxu0 0
      %967 = vmatpush2.bf16.msra.mxu0 0
      %968 = vmatprep.subr.bf16.mxu0 0
      %969 = vmatpush2.bf16.msra.mxu0 0
      %970 = vmatprep.subr.bf16.mxu0 0
      %971 = vmatpush2.bf16.msra.mxu0 0
      %972 = vmatprep.mubr.bf16.mxu0 0
      %973 = vmatmul.mubr.bf16.gmra.mxu0 %v931
      %v974 = vpop.f32.mrf.mxu0
      %v975 = vadd.f32 %v927, %v974
      %v976 = vpop.f32.mrf.mxu0
      %v977 = vadd.f32 %v927, %v976
      %v978 = vpop.f32.mrf.mxu0
      %v979 = vpop.f32.mrf.mxu0
      %980 = vdwg.mxu0
      %v981 = vmax.f32 %v975, 0.0
      %v982 = vmax.f32 %v977, 0.0
      %v983 = vld [vmem:[%s11] sm:$0x3]
      %v984 = vpack.c.bf16 %v981, %v981
      %v985 = vpack.c.bf16 %v982, %v982
      %v986 = vld [vmem:[%s12] sm:$0x7]
      %988 = vset.pattern.permute.xlu0 0
      %989 = vperm.xlu0 %988, %v986
      %v990 = vpop.permute.xlu0 %989
      %v993 = vsel %vm567, %v983, 0
      %v996 = vsel %vm580, %v984, 0
      %v999 = vsel %vm580, %v985, 0
      %1001 = vmatprep.subr.bf16.mxu0 0
      %1002 = vmatpush1.bf16.msra.mxu0 0
      %1003 = vmatprep.subr.bf16.mxu0 0
      %1004 = vmatpush1.bf16.msra.mxu0 0
      %1005 = vmatprep.subr.bf16.mxu0 0
      %1006 = vmatpush1.bf16.msra.mxu0 0
      %1007 = vmatprep.subr.bf16.mxu0 0
      %1008 = vmatpush1.bf16.msra.mxu0 0
      %1009 = vmatprep.subr.bf16.mxu0 0
      %1010 = vmatpush1.bf16.msra.mxu0 0
      %1011 = vmatprep.subr.bf16.mxu0 0
      %1012 = vmatpush1.bf16.msra.mxu0 0
      %1013 = vmatprep.subr.bf16.mxu0 0
      %1014 = vmatpush1.bf16.msra.mxu0 0
      %1015 = vmatprep.subr.bf16.mxu0 %v999
      %1016 = vmatpush1.bf16.msra.mxu0 %v996
      %1017 = vmatprep.subr.bf16.mxu0 0
      %1018 = vmatpush2.bf16.msra.mxu0 0
      %1019 = vmatprep.subr.bf16.mxu0 0
      %1020 = vmatpush2.bf16.msra.mxu0 0
      %1021 = vmatprep.subr.bf16.mxu0 0
      %1022 = vmatpush2.bf16.msra.mxu0 0
      %1023 = vmatprep.subr.bf16.mxu0 0
      %1024 = vmatpush2.bf16.msra.mxu0 0
      %1025 = vmatprep.subr.bf16.mxu0 0
      %1026 = vmatpush2.bf16.msra.mxu0 0
      %1027 = vmatprep.subr.bf16.mxu0 0
      %1028 = vmatpush2.bf16.msra.mxu0 0
      %1029 = vmatprep.subr.bf16.mxu0 0
      %1030 = vmatpush2.bf16.msra.mxu0 0
      %1031 = vmatprep.subr.bf16.mxu0 0
      %1032 = vmatpush2.bf16.msra.mxu0 0
      %1033 = vmatprep.mubr.bf16.mxu0 0
      %1034 = vmatmul.mubr.bf16.gmra.mxu0 %v993
      %v1035 = vpop.f32.mrf.mxu0
      %v1036 = vadd.f32 %v990, %v1035
      %v1037 = vpop.f32.mrf.mxu0
      %v1038 = vadd.f32 %v990, %v1037
      %v1039 = vpop.f32.mrf.mxu0
      %v1040 = vpop.f32.mrf.mxu0
      %1041 = vdwg.mxu0
      %v1042 = vpack.c.bf16 %v1036, %v1036
      %v1043 = vpack.c.bf16 %v1038, %v1038
      %v1046 = vcombine.low %v1042, %v1043
      %v1048 = vunpack.c.l.s4 1983009808
      %v1049 = vunpack.c.0.s8 %v1048
      %v1050 = vlaneseq
      %v1051 = vshrl.u32 %v1050, 7
      %v1052 = vsub.s32 %v1049, %v1051
      %v1053 = vrot.slane %v1046, %v1052
      %vm1055 = vcmask 1041408
      %vm1056 = vsmask.f32 1280
      %vm1057 = vmand %vm1055, %vm1056
      %vm1058 = vcmask 1043458
      %vm1059 = vsmask.f32 3328
      %vm1060 = vmand %vm1058, %vm1059
      %vm1061 = vmor %vm1060, %vm1057
      %v1062 = vld [vmem:[%s478] sm:$0xf]
      %v1063 = vsel %vm1061, %v1053, %v1062
      %1064 = vst [vmem:[%s478] sm:$0xf] %v1063
      %s1065 = smul.u32 2, %s29
      %p1066 = scmp.lt.s32.totalorder %s28, 1
      %s1067 = scalar_select %p1066, %s28, 1
      %p1068 = scmp.lt.s32.totalorder %s1065, 1
      %s1069 = scalar_select %p1068, %s1065, 1
      %s1070 = smul.addr %s1067, 2
      %s1071 = sadd.s32 %s1069, %s1070
      %s1072 = smul.addr %s1071, 2
      %s1073 = scalar_lea.vmem %s13, %s1072
      // Predicated region
      $region73: #{conv_mlp_forward.1} parent=71 // pred_check
        %p1074 = pneg %p336
      $region74: #{conv_mlp_forward.1} parent=71 // pred_check_branch
        %1076 = sbr.rel (%p1074) target = $region76
      $region75: #{conv_mlp_forward.1} parent=71 // pred_region
        %s1077 = smul.u32 2, %s29
      $region76: #{conv_mlp_forward.1} parent=71 // pred_fallthru
        _
    $region72: #{conv_mlp_forward.1} parent=5 // pred_fallthru
      _
    %p1078 = scmp.le.s32.totalorder 2, %s19
    // Predicated region
    $region77: #{conv_mlp_forward.1} parent=5 // pred_check
      %p1079 = pneg %p1078
    $region78: #{conv_mlp_forward.1} parent=5 // pred_check_branch
      %1081 = sbr.rel (%p1079) target = $region80
    $region79: #{conv_mlp_forward.1} parent=5 // pred_region
      %s1082 = ssub.s32 %s19, 2
      // Predicated region
      $region81: #{conv_mlp_forward.1} parent=79 // pred_check
        %p1083 = pneg %p342
      $region82: #{conv_mlp_forward.1} parent=79 // pred_check_branch
        %1085 = sbr.rel (%p1083) target = $region84
      $region83: #{conv_mlp_forward.1} parent=79 // pred_region
        %s1086 = smul.u32 2, %s31
        %p1087 = scmp.lt.s32.totalorder %s30, 1
        %s1088 = scalar_select %p1087, %s30, 1
        %p1089 = scmp.lt.s32.totalorder %s1086, 1
        %s1090 = scalar_select %p1089, %s1086, 1
        %s1091 = smul.addr %s1088, 2
        %s1092 = sadd.s32 %s1090, %s1091
        %s1093 = smul.addr %s1092, 2
        %s1094 = scalar_lea.vmem %s13, %s1093
      $region84: #{conv_mlp_forward.1} parent=79 // pred_fallthru
        _
    $region80: #{conv_mlp_forward.1} parent=5 // pred_fallthru
      _
  $region6: #{conv_mlp_forward.1} parent=0 // loop_footer
    %s23 = sadd.s32 1, %s19
  $region7: #{conv_mlp_forward.1} parent=0 // loop_footer_branch
    %18 = sbr.rel target = $region3
  $region8: #{conv_mlp_forward.1} parent=0 // loop_exit
    _

</llo_original>
